<compile_context>
chip_gen: v6e
topology: v6e:2x2x1
jax: 0.10.0
libtpu: 0.0.40
codegen_flags: <defaults>
</compile_context>

<pallas_src>
import functools

import jax
import jax.numpy as jnp
from jax.experimental import pallas as pl
from jax.experimental.pallas import tpu as pltpu


def _round_up(x, m):
    return (x + m - 1) // m * m


def _mlp_kernel(x_ref, w1_ref, b1_ref, w2_ref, b2_ref, w3t_ref, b3_ref, o_ref):
    # Layer 1: bf16 matmul on the MXU, f32 accumulate; bias + ReLU in f32,
    # cast to bf16 fused into the epilogue (halves the dominant VMEM temp).
    x = x_ref[...].astype(jnp.bfloat16)                       # (bb, D_in)
    h1 = jnp.dot(x, w1_ref[...], preferred_element_type=jnp.float32)
    h1 = jnp.maximum(h1 + b1_ref[...], 0.0).astype(jnp.bfloat16)  # (bb, 512)

    # Layer 2.
    h2 = jnp.dot(h1, w2_ref[...], preferred_element_type=jnp.float32)
    h2 = jnp.maximum(h2 + b2_ref[...], 0.0).astype(jnp.bfloat16)  # (bb, 64)

    # Layer 3, transposed: contract the 64-wide hidden dim of w3t (1, 64) with
    # the last dim of h2 (bb, 64) -> (1, bb).  Batch lands on lanes, so the
    # final store is lane-dense.
    logits_t = jax.lax.dot_general(
        w3t_ref[...], h2,
        dimension_numbers=(((1,), (1,)), ((), ())),
        preferred_element_type=jnp.float32)                   # (1, bb)
    logits_t = logits_t + b3_ref[0, 0]                        # SMEM scalar bias
    o_ref[...] = jax.nn.sigmoid(logits_t).astype(o_ref.dtype)


def _choose_tile(B, block_b):
    """Pick the batch tile bb and grid size.  No padding copies:
    - single tile (block dims == array dims) when B is small;
    - otherwise bb is a multiple of 128 (lane-dense output, sublane-aligned x),
      capped so there are at least 2 grid steps (v7x megacore), and the last
      tile may be ragged (Pallas masks the out-of-bounds output lanes)."""
    if B <= 256:
        return B, 1
    bb = _round_up(min(block_b, pl.cdiv(B, 2)), 128)
    bb = max(bb, 128)
    return bb, pl.cdiv(B, bb)


@functools.partial(jax.jit, static_argnames=("block_b",))
def mlp_forward(x, params, block_b=2048):
    """x: (B, D_in) float32 (or bf16). Returns (B, 1) float32 in [0, 1]."""
    w1, b1, w2, b2, w3t, b3 = params
    B, D_in = x.shape
    H1 = w1.shape[1]          # 512
    H2 = w2.shape[1]          # 64

    bb, n_tiles = _choose_tile(B, block_b)
    grid = (n_tiles,)

    in_specs = [
        pl.BlockSpec((bb, D_in), lambda i: (i, 0)),           # x tile (streams)
        pl.BlockSpec((D_in, H1), lambda i: (0, 0)),           # W1 (resident)
        pl.BlockSpec((1, H1), lambda i: (0, 0)),              # b1
        pl.BlockSpec((H1, H2), lambda i: (0, 0)),             # W2
        pl.BlockSpec((1, H2), lambda i: (0, 0)),              # b2
        pl.BlockSpec((1, H2), lambda i: (0, 0)),              # W3^T (1, 64)
        pl.BlockSpec(memory_space=pltpu.MemorySpace.SMEM),    # b3 scalar
    ]
    # Lane-dense output: one (1, bb) row per batch tile; the ragged last tile
    # (when B % bb != 0) gets a masked partial-lane store from Pallas.
    out_specs = pl.BlockSpec((1, bb), lambda i: (0, i))

    flops = 2 * B * (D_in * H1 + H1 * H2 + H2)
    bytes_accessed = (
        x.size * x.dtype.itemsize
        + w1.size * w1.dtype.itemsize
        + w2.size * w2.dtype.itemsize
        + w3t.size * w3t.dtype.itemsize
        + (b1.size + b2.size + b3.size) * 4
        + B * 4
    )

    out_t = pl.pallas_call(
        _mlp_kernel,
        out_shape=jax.ShapeDtypeStruct((1, B), jnp.float32),
        grid=grid,
        in_specs=in_specs,
        out_specs=out_specs,
        compiler_params=pltpu.CompilerParams(
            dimension_semantics=("parallel",),
            # Sized for v7x's 64 MiB/TC VMEM; raise on v5e/v6e for huge tiles.
            vmem_limit_bytes=48 * 1024 * 1024,
        ),
        cost_estimate=pl.CostEstimate(
            flops=flops, transcendentals=B, bytes_accessed=bytes_accessed),
    )(x, w1, b1, w2, b2, w3t, b3)

    return out_t.reshape(B, 1)


def init_mlp_params(key, input_size):
    """Deterministic synthetic params matching the PyTorch module's shapes.

    PyTorch nn.Linear(in, out): weight (out, in), bias (out,).  We store
    w1/w2 as (in, out) bf16, w3 in native (1, 64) bf16 (used transposed in the
    kernel), and biases in f32.
    """
    def _layer(key, fan_in, fan_out, transpose):
        kw, kb = jax.random.split(key)
        bound = 1.0 / jnp.sqrt(fan_in)
        shape = (fan_out, fan_in) if transpose else (fan_in, fan_out)
        w = jax.random.uniform(kw, shape, jnp.float32, -bound, bound)
        b = jax.random.uniform(kb, (1, fan_out), jnp.float32, -bound, bound)
        return w.astype(jnp.bfloat16), b

    key, k1, k2, k3 = jax.random.split(key, 4)
    w1, b1 = _layer(k1, input_size, 512, transpose=False)   # (in, 512)
    w2, b2 = _layer(k2, 512, 64, transpose=False)           # (512, 64)
    w3t, b3 = _layer(k3, 64, 1, transpose=True)             # (1, 64), b3 (1,1)
    return (w1, b1, w2, b2, w3t, b3)


def mlp_reference_bf16(x, params):
    """Plain-JAX reference mirroring the kernel's bf16-matmul / f32-acc math."""
    w1, b1, w2, b2, w3t, b3 = params
    h1 = jnp.maximum(
        jnp.dot(x.astype(jnp.bfloat16), w1,
                preferred_element_type=jnp.float32) + b1, 0.0)
    h2 = jnp.maximum(
        jnp.dot(h1.astype(jnp.bfloat16), w2,
                preferred_element_type=jnp.float32) + b2, 0.0)
    logits = jnp.dot(h2.astype(jnp.bfloat16), w3t.T,
                     preferred_element_type=jnp.float32) + b3
    return jax.nn.sigmoid(logits)


def mlp_reference_f32(x, params):
    """Full-f32 reference (primary correctness check)."""
    w1, b1, w2, b2, w3t, b3 = params
    h1 = jnp.maximum(x @ w1.astype(jnp.float32) + b1, 0.0)
    h2 = jnp.maximum(h1 @ w2.astype(jnp.float32) + b2, 0.0)
    return jax.nn.sigmoid(h2 @ w3t.astype(jnp.float32).T + b3)


if __name__ == "__main__":
    key = jax.random.PRNGKey(0)
    key, kx, kp = jax.random.split(key, 3)

    batch = 16
    input_size = 32  # small synthetic feature dim

    x = jax.random.normal(kx, (batch, input_size), jnp.float32)
    params = init_mlp_params(kp, input_size)

    # Small single-tile run.
    out = jax.block_until_ready(mlp_forward(x, params))
    assert out.shape == (batch, 1)
    ref32 = mlp_reference_f32(x, params)
    assert jnp.allclose(out, ref32, atol=2e-2), "mismatch vs f32 reference"
    refbf = mlp_reference_bf16(x, params)
    assert jnp.allclose(out, refbf, atol=5e-3), "mismatch vs bf16 reference"

    # Multi-tile path with a ragged last tile (B not a multiple of the tile,
    # no padding copy): bb=128, grid=3, last tile covers 44 valid rows.
    x2 = jax.random.normal(jax.random.PRNGKey(1), (300, input_size), jnp.float32)
    out2 = jax.block_until_ready(mlp_forward(x2, params, block_b=128))
    assert out2.shape == (300, 1)
    ref2 = mlp_reference_f32(x2, params)
    assert jnp.allclose(out2, ref2, atol=2e-2), "mismatch (ragged tiled path)"

    # Default-tile path: B=300 > 256 -> bb=256, grid=2 (both TCs busy on v7x).
    out3 = jax.block_until_ready(mlp_forward(x2, params))
    assert out3.shape == (300, 1)
    assert jnp.allclose(out3, ref2, atol=2e-2), "mismatch (default tile path)"

    print("KERNEL_OK")
</pallas_src>

<mosaic_0001>
module attributes {stable_mosaic.version = 11 : i64} {
  func.func @_mlp_kernel(%arg0: i32, %arg1: memref<16x32xf32, #tpu.memory_space<vmem>>, %arg2: memref<32x512xbf16, #tpu.memory_space<vmem>>, %arg3: memref<1x512xf32, #tpu.memory_space<vmem>>, %arg4: memref<512x64xbf16, #tpu.memory_space<vmem>>, %arg5: memref<1x64xf32, #tpu.memory_space<vmem>>, %arg6: memref<1x64xbf16, #tpu.memory_space<vmem>>, %arg7: memref<1x1xf32, #tpu.memory_space<smem>>, %arg8: memref<1x16xf32, #tpu.memory_space<vmem>>) attributes {dimension_semantics = [#tpu.dimension_semantics<parallel>], iteration_bounds = array<i64: 1>, scalar_prefetch = 0 : i64, scratch_operands = 0 : i64, tpu.core_type = #tpu.core_type<tc>, window_params = [{transform_indices = @transform_0, window_bounds = array<i64: 16, 32>}, {pipeline_mode = #tpu.pipeline_mode<synchronous>, transform_indices = @transform_1, window_bounds = array<i64: 32, 512>}, {pipeline_mode = #tpu.pipeline_mode<synchronous>, transform_indices = @transform_2, window_bounds = array<i64: 1, 512>}, {pipeline_mode = #tpu.pipeline_mode<synchronous>, transform_indices = @transform_3, window_bounds = array<i64: 512, 64>}, {pipeline_mode = #tpu.pipeline_mode<synchronous>, transform_indices = @transform_4, window_bounds = array<i64: 1, 64>}, {pipeline_mode = #tpu.pipeline_mode<synchronous>, transform_indices = @transform_5, window_bounds = array<i64: 1, 64>}, {transform_indices = @transform_6, window_bounds = array<i64: 1, 1>}, {transform_indices = @transform_7, window_bounds = array<i64: 1, 16>}]} {
    %c0 = arith.constant 0 : index
    %c0_0 = arith.constant 0 : index
    %0 = vector.load %arg1[%c0, %c0_0] : memref<16x32xf32, #tpu.memory_space<vmem>>, vector<16x32xf32>
    %1 = arith.truncf %0 : vector<16x32xf32> to vector<16x32xbf16>
    %c0_1 = arith.constant 0 : index
    %c0_2 = arith.constant 0 : index
    %2 = vector.load %arg2[%c0_1, %c0_2] : memref<32x512xbf16, #tpu.memory_space<vmem>>, vector<32x512xbf16>
    %cst = arith.constant dense<0.000000e+00> : vector<16x512xf32>
    %3 = tpu.matmul %1, %2, %cst {dimension_numbers = #tpu.dot_dimension_numbers<[1], [0], [0], [1], [0, 0, 1, 1], [], []>} : vector<16x32xbf16>, vector<32x512xbf16>, vector<16x512xf32> -> vector<16x512xf32>
    %c0_3 = arith.constant 0 : index
    %c0_4 = arith.constant 0 : index
    %4 = vector.load %arg3[%c0_3, %c0_4] : memref<1x512xf32, #tpu.memory_space<vmem>>, vector<1x512xf32>
    %5 = vector.broadcast %4 : vector<1x512xf32> to vector<16x512xf32>
    %6 = arith.addf %3, %5 : vector<16x512xf32>
    %cst_5 = arith.constant 0.000000e+00 : f32
    %7 = vector.broadcast %cst_5 : f32 to vector<16x512xf32>
    %8 = arith.maximumf %6, %7 : vector<16x512xf32>
    %9 = arith.truncf %8 : vector<16x512xf32> to vector<16x512xbf16>
    %c0_6 = arith.constant 0 : index
    %c0_7 = arith.constant 0 : index
    %10 = vector.load %arg4[%c0_6, %c0_7] : memref<512x64xbf16, #tpu.memory_space<vmem>>, vector<512x64xbf16>
    %cst_8 = arith.constant dense<0.000000e+00> : vector<16x64xf32>
    %11 = tpu.matmul %9, %10, %cst_8 {dimension_numbers = #tpu.dot_dimension_numbers<[1], [0], [0], [1], [0, 0, 1, 1], [], []>} : vector<16x512xbf16>, vector<512x64xbf16>, vector<16x64xf32> -> vector<16x64xf32>
    %c0_9 = arith.constant 0 : index
    %c0_10 = arith.constant 0 : index
    %12 = vector.load %arg5[%c0_9, %c0_10] : memref<1x64xf32, #tpu.memory_space<vmem>>, vector<1x64xf32>
    %13 = vector.broadcast %12 : vector<1x64xf32> to vector<16x64xf32>
    %14 = arith.addf %11, %13 : vector<16x64xf32>
    %cst_11 = arith.constant 0.000000e+00 : f32
    %15 = vector.broadcast %cst_11 : f32 to vector<16x64xf32>
    %16 = arith.maximumf %14, %15 : vector<16x64xf32>
    %17 = arith.truncf %16 : vector<16x64xf32> to vector<16x64xbf16>
    %c0_12 = arith.constant 0 : index
    %c0_13 = arith.constant 0 : index
    %18 = vector.load %arg6[%c0_12, %c0_13] : memref<1x64xbf16, #tpu.memory_space<vmem>>, vector<1x64xbf16>
    %cst_14 = arith.constant dense<0.000000e+00> : vector<1x16xf32>
    %19 = tpu.matmul %18, %17, %cst_14 {dimension_numbers = #tpu.dot_dimension_numbers<[1], [1], [0], [0], [0, 0, 1, 0], [], []>} : vector<1x64xbf16>, vector<16x64xbf16>, vector<1x16xf32> -> vector<1x16xf32>
    %c0_15 = arith.constant 0 : index
    %c0_16 = arith.constant 0 : index
    %20 = memref.load %arg7[%c0_15, %c0_16] : memref<1x1xf32, #tpu.memory_space<smem>>
    %21 = vector.broadcast %20 : f32 to vector<1x16xf32>
    %22 = arith.addf %19, %21 : vector<1x16xf32>
    %23 = arith.negf %22 : vector<1x16xf32>
    %24 = math.exp %23 : vector<1x16xf32>
    %cst_17 = arith.constant 1.000000e+00 : f32
    %25 = vector.broadcast %cst_17 : f32 to vector<1x16xf32>
    %26 = arith.addf %25, %24 : vector<1x16xf32>
    %27 = arith.divf %25, %26 : vector<1x16xf32>
    %c0_18 = arith.constant 0 : index
    %c0_19 = arith.constant 0 : index
    %28 = vector.load %arg8[%c0_18, %c0_19] : memref<1x16xf32, #tpu.memory_space<vmem>>, vector<1x16xf32>
    tpu.vector_store %arg8[%c0_18, %c0_19], %27 {strides = array<i32>} : memref<1x16xf32, #tpu.memory_space<vmem>>, vector<1x16xf32>,
    return
  }
  func.func @transform_0(%arg0: i32) -> (i32, i32) {
    %c0_i32 = arith.constant 0 : i32
    %c0_i32_0 = arith.constant 0 : i32
    return %arg0, %c0_i32 : i32, i32
  }
  func.func @transform_1(%arg0: i32) -> (i32, i32) {
    %c0_i32 = arith.constant 0 : i32
    %c0_i32_0 = arith.constant 0 : i32
    %c0_i32_1 = arith.constant 0 : i32
    return %c0_i32, %c0_i32_0 : i32, i32
  }
  func.func @transform_2(%arg0: i32) -> (i32, i32) {
    %c0_i32 = arith.constant 0 : i32
    %c0_i32_0 = arith.constant 0 : i32
    %c0_i32_1 = arith.constant 0 : i32
    return %c0_i32, %c0_i32_0 : i32, i32
  }
  func.func @transform_3(%arg0: i32) -> (i32, i32) {
    %c0_i32 = arith.constant 0 : i32
    %c0_i32_0 = arith.constant 0 : i32
    %c0_i32_1 = arith.constant 0 : i32
    return %c0_i32, %c0_i32_0 : i32, i32
  }
  func.func @transform_4(%arg0: i32) -> (i32, i32) {
    %c0_i32 = arith.constant 0 : i32
    %c0_i32_0 = arith.constant 0 : i32
    %c0_i32_1 = arith.constant 0 : i32
    return %c0_i32, %c0_i32_0 : i32, i32
  }
  func.func @transform_5(%arg0: i32) -> (i32, i32) {
    %c0_i32 = arith.constant 0 : i32
    %c0_i32_0 = arith.constant 0 : i32
    %c0_i32_1 = arith.constant 0 : i32
    return %c0_i32, %c0_i32_0 : i32, i32
  }
  func.func @transform_6(%arg0: i32) -> (i32, i32) {
    %c0_i32 = arith.constant 0 : i32
    %c0_i32_0 = arith.constant 0 : i32
    %c0_i32_1 = arith.constant 0 : i32
    return %c0_i32, %c0_i32_0 : i32, i32
  }
  func.func @transform_7(%arg0: i32) -> (i32, i32) {
    %c0_i32 = arith.constant 0 : i32
    %c0_i32_0 = arith.constant 0 : i32
    return %c0_i32, %arg0 : i32, i32
  }
}

</mosaic_0001>

<llo_original>
// kernel: mlp_forward.1
$region0: #{mlp_forward.1}
  #allocation0 [shape = 'u32[]', space=smem, size = 0x4, offset = 0x4, fixed_abs, tag = 'smem constant byte address 0x4 - core index']
  #allocation1 [shape = 'u32[144,128]{1,0:T(1,128)}', space=vmem, size = 0x12000, scoped, tag = 'internal scratch']
  #allocation2 [shape = 'f32[1,1]{1,0:T(1,128)S(6)}', space=smem, size = 0x200, scoped, tag = 'scoped memory for mlp_forward.1']
  %s0 = inlined_call_operand.vmem [shape: f32[16,32], index: 0, kind: input, shape index: {}]
  %s1 = inlined_call_operand.vmem [shape: bf16[32,512], index: 1, kind: input, shape index: {}]
  %s2 = inlined_call_operand.vmem [shape: f32[1,512], index: 2, kind: input, shape index: {}]
  %s3 = inlined_call_operand.vmem [shape: bf16[512,64], index: 3, kind: input, shape index: {}]
  %s4 = inlined_call_operand.vmem [shape: f32[1,64], index: 4, kind: input, shape index: {}]
  %s5 = inlined_call_operand.vmem [shape: bf16[1,64], index: 5, kind: input, shape index: {}]
  %s6 = inlined_call_operand.<no memory space> [shape: f32[1,1], index: 6, kind: input, shape index: {}]
  %s7 = inlined_call_operand.hbm [shape: f32[1,16], index: 7, kind: output, shape index: {}]
  %s8 = sld [smem:[#allocation0]]
  $region38: #{mlp_forward.1} parent=0
    _
  %s10 = ssub.s32 1, %s8
  %s11 = scalar_select 0, %s10, %s8
  %12 = sst [smem:[#allocation2]] %s6
  $region1: #{mlp_forward.1} parent=0
    #allocation3 [shape = 'u8[512]{0}', space=vmem, size = 0x400, scoped, tag = 'output window, operand 0, single buffered']
    #allocation4 [shape = 's32[1]{0}', space=sflag, size = 0x4, scoped, tag = 'scoped memory for mlp_forward.1']
    %13 = vsyncpa [#allocation4], 0
    // Predicated region
    $region2: #{mlp_forward.1} parent=1 // pred_check
      _
    $region3: #{mlp_forward.1} parent=1 // pred_check_branch
      %15 = sbr.rel (0) target = $region5
    $region4: #{mlp_forward.1} parent=1 // pred_region
      _
    $region5: #{mlp_forward.1} parent=1 // pred_fallthru
      _
    // Predicated region
    $region6: #{mlp_forward.1} parent=1 // pred_check
      _
    $region7: #{mlp_forward.1} parent=1 // pred_check_branch
      %17 = sbr.rel (0) target = $region9
    $region8: #{mlp_forward.1} parent=1 // pred_region
      _
    $region9: #{mlp_forward.1} parent=1 // pred_fallthru
      _
    // Predicated region
    $region10: #{mlp_forward.1} parent=1 // pred_check
      _
    $region11: #{mlp_forward.1} parent=1 // pred_check_branch
      %19 = sbr.rel (0) target = $region13
    $region12: #{mlp_forward.1} parent=1 // pred_region
      _
    $region13: #{mlp_forward.1} parent=1 // pred_fallthru
      _
    // Predicated region
    $region14: #{mlp_forward.1} parent=1 // pred_check
      _
    $region15: #{mlp_forward.1} parent=1 // pred_check_branch
      %21 = sbr.rel (0) target = $region17
    $region16: #{mlp_forward.1} parent=1 // pred_region
      _
    $region17: #{mlp_forward.1} parent=1 // pred_fallthru
      _
    // Predicated region
    $region18: #{mlp_forward.1} parent=1 // pred_check
      _
    $region19: #{mlp_forward.1} parent=1 // pred_check_branch
      %23 = sbr.rel (0) target = $region21
    $region20: #{mlp_forward.1} parent=1 // pred_region
      _
    $region21: #{mlp_forward.1} parent=1 // pred_fallthru
      _
    // Predicated region
    $region22: #{mlp_forward.1} parent=1 // pred_check
      _
    $region23: #{mlp_forward.1} parent=1 // pred_check_branch
      %25 = sbr.rel (0) target = $region25
    $region24: #{mlp_forward.1} parent=1 // pred_region
      _
    $region25: #{mlp_forward.1} parent=1 // pred_fallthru
      _
    // Predicated region
    $region26: #{mlp_forward.1} parent=1 // pred_check
      _
    $region27: #{mlp_forward.1} parent=1 // pred_check_branch
      %27 = sbr.rel (0) target = $region29
    $region28: #{mlp_forward.1} parent=1 // pred_region
      _
    $region29: #{mlp_forward.1} parent=1 // pred_fallthru
      _
    %v29 = vld [vmem:[%s0] sm:$0xff]
    %v30 = vld [vmem:[%s0 + $0x8] sm:$0xff]
    %v31 = vpack.c.bf16 %v30, %v29
    %v32 = vld [vmem:[%s1] sm:$0xff]
    %v33 = vld [vmem:[%s1 + $0x8] sm:$0xff]
    %v34 = vld [vmem:[%s1 + $0x10] sm:$0xff]
    %v35 = vld [vmem:[%s1 + $0x18] sm:$0xff]
    %v36 = vld [vmem:[%s1 + $0x20] sm:$0xff]
    %v37 = vld [vmem:[%s1 + $0x28] sm:$0xff]
    %v38 = vld [vmem:[%s1 + $0x30] sm:$0xff]
    %v39 = vld [vmem:[%s1 + $0x38] sm:$0xff]
    %v40 = vld [vmem:[%s2] sm:$0xf]
    %v42 = vlaneseq
    %v43 = vshrl.u32 %v42, 7
    %v44 = vsub.s32 0, %v43
    %v45 = vrot.slane %v40, %v44
    %v46 = vlaneseq
    %v47 = vshrl.u32 %v46, 7
    %v48 = vsub.s32 1, %v47
    %v49 = vrot.slane %v40, %v48
    %v50 = vlaneseq
    %v51 = vshrl.u32 %v50, 7
    %v52 = vsub.s32 2, %v51
    %v53 = vrot.slane %v40, %v52
    %v54 = vlaneseq
    %v55 = vshrl.u32 %v54, 7
    %v56 = vsub.s32 3, %v55
    %v57 = vrot.slane %v40, %v56
    %v70 = vunpack.c.l.b16 %v32
    %v71 = vunpack.c.h.b16 %v32
    %v72 = vunpack.c.l.b16 %v33
    %v73 = vunpack.c.h.b16 %v33
    %v74 = vunpack.c.l.b16 %v34
    %v75 = vunpack.c.h.b16 %v34
    %v76 = vunpack.c.l.b16 %v35
    %v77 = vunpack.c.h.b16 %v35
    %v78 = vunpack.c.l.b16 %v36
    %v79 = vunpack.c.h.b16 %v36
    %v80 = vunpack.c.l.b16 %v37
    %v81 = vunpack.c.h.b16 %v37
    %v82 = vunpack.c.l.b16 %v38
    %v83 = vunpack.c.h.b16 %v38
    %v84 = vunpack.c.l.b16 %v39
    %v85 = vunpack.c.h.b16 %v39
    %v86 = vpack.c.b16 %v74, %v70
    %v87 = vpack.c.b16 %v75, %v71
    %v88 = vpack.c.b16 %v76, %v72
    %v89 = vpack.c.b16 %v77, %v73
    %v90 = vpack.c.b16 %v82, %v78
    %v91 = vpack.c.b16 %v83, %v79
    %v92 = vpack.c.b16 %v84, %v80
    %v93 = vpack.c.b16 %v85, %v81
    %vm102 = vcmask 261120
    %v104 = vsel %vm102, %v31, 0
    %106 = vmatprep.subr.bf16.mxu0 0
    %107 = vmatpush1.bf16.msra.mxu0 0
    %108 = vmatprep.subr.bf16.mxu0 0
    %109 = vmatpush1.bf16.msra.mxu0 0
    %110 = vmatprep.subr.bf16.mxu0 0
    %111 = vmatpush1.bf16.msra.mxu0 0
    %112 = vmatprep.subr.bf16.mxu0 0
    %113 = vmatpush1.bf16.msra.mxu0 0
    %114 = vmatprep.subr.bf16.mxu0 0
    %115 = vmatpush1.bf16.msra.mxu0 0
    %116 = vmatprep.subr.bf16.mxu0 0
    %117 = vmatpush1.bf16.msra.mxu0 0
    %118 = vmatprep.subr.bf16.mxu0 %v91
    %119 = vmatpush1.bf16.msra.mxu0 %v90
    %120 = vmatprep.subr.bf16.mxu0 %v87
    %121 = vmatpush1.bf16.msra.mxu0 %v86
    %122 = vmatprep.subr.bf16.mxu0 0
    %123 = vmatpush2.bf16.msra.mxu0 0
    %124 = vmatprep.subr.bf16.mxu0 0
    %125 = vmatpush2.bf16.msra.mxu0 0
    %126 = vmatprep.subr.bf16.mxu0 0
    %127 = vmatpush2.bf16.msra.mxu0 0
    %128 = vmatprep.subr.bf16.mxu0 0
    %129 = vmatpush2.bf16.msra.mxu0 0
    %130 = vmatprep.subr.bf16.mxu0 0
    %131 = vmatpush2.bf16.msra.mxu0 0
    %132 = vmatprep.subr.bf16.mxu0 0
    %133 = vmatpush2.bf16.msra.mxu0 0
    %134 = vmatprep.subr.bf16.mxu0 0
    %135 = vmatpush2.bf16.msra.mxu0 0
    %136 = vmatprep.subr.bf16.mxu0 0
    %137 = vmatpush2.bf16.msra.mxu0 0
    %138 = vmatprep.mubr.bf16.mxu0 0
    %139 = vmatmul.mubr.bf16.gmra.mxu0 %v104
    %v140 = vpop.f32.mrf.mxu0
    %v141 = vadd.f32 %v45, %v140
    %v142 = vpop.f32.mrf.mxu0
    %v143 = vadd.f32 %v49, %v142
    %v144 = vpop.f32.mrf.mxu0
    %v145 = vadd.f32 %v45, %v144
    %v146 = vpop.f32.mrf.mxu0
    %v147 = vadd.f32 %v49, %v146
    %148 = vdwg.mxu0
    %149 = vmatprep.subr.bf16.mxu0 0
    %150 = vmatpush1.bf16.msra.mxu0 0
    %151 = vmatprep.subr.bf16.mxu0 0
    %152 = vmatpush1.bf16.msra.mxu0 0
    %153 = vmatprep.subr.bf16.mxu0 0
    %154 = vmatpush1.bf16.msra.mxu0 0
    %155 = vmatprep.subr.bf16.mxu0 0
    %156 = vmatpush1.bf16.msra.mxu0 0
    %157 = vmatprep.subr.bf16.mxu0 0
    %158 = vmatpush1.bf16.msra.mxu0 0
    %159 = vmatprep.subr.bf16.mxu0 0
    %160 = vmatpush1.bf16.msra.mxu0 0
    %161 = vmatprep.subr.bf16.mxu0 %v93
    %162 = vmatpush1.bf16.msra.mxu0 %v92
    %163 = vmatprep.subr.bf16.mxu0 %v89
    %164 = vmatpush1.bf16.msra.mxu0 %v88
    %165 = vmatprep.subr.bf16.mxu0 0
    %166 = vmatpush2.bf16.msra.mxu0 0
    %167 = vmatprep.subr.bf16.mxu0 0
    %168 = vmatpush2.bf16.msra.mxu0 0
    %169 = vmatprep.subr.bf16.mxu0 0
    %170 = vmatpush2.bf16.msra.mxu0 0
    %171 = vmatprep.subr.bf16.mxu0 0
    %172 = vmatpush2.bf16.msra.mxu0 0
    %173 = vmatprep.subr.bf16.mxu0 0
    %174 = vmatpush2.bf16.msra.mxu0 0
    %175 = vmatprep.subr.bf16.mxu0 0
    %176 = vmatpush2.bf16.msra.mxu0 0
    %177 = vmatprep.subr.bf16.mxu0 0
    %178 = vmatpush2.bf16.msra.mxu0 0
    %179 = vmatprep.subr.bf16.mxu0 0
    %180 = vmatpush2.bf16.msra.mxu0 0
    %181 = vmatprep.mubr.bf16.mxu0 0
    %182 = vmatmul.mubr.bf16.gmra.mxu0 %v104
    %v183 = vpop.f32.mrf.mxu0
    %v184 = vadd.f32 %v53, %v183
    %v185 = vpop.f32.mrf.mxu0
    %v186 = vadd.f32 %v57, %v185
    %v187 = vpop.f32.mrf.mxu0
    %v188 = vadd.f32 %v53, %v187
    %v189 = vpop.f32.mrf.mxu0
    %v190 = vadd.f32 %v57, %v189
    %191 = vdwg.mxu0
    %v192 = vmax.f32 %v141, 0.0
    %v193 = vmax.f32 %v143, 0.0
    %v194 = vmax.f32 %v184, 0.0
    %v195 = vmax.f32 %v186, 0.0
    %v196 = vmax.f32 %v145, 0.0
    %v197 = vmax.f32 %v147, 0.0
    %v198 = vmax.f32 %v188, 0.0
    %v199 = vmax.f32 %v190, 0.0
    %v200 = vpack.c.bf16 %v196, %v192
    %v201 = vpack.c.bf16 %v197, %v193
    %v202 = vpack.c.bf16 %v198, %v194
    %v203 = vpack.c.bf16 %v199, %v195
    %v204 = vld [vmem:[%s3] sm:$0xf]
    %v205 = vld [vmem:[%s3 + $0x4] sm:$0xf]
    %v206 = vld [vmem:[%s3 + $0x8] sm:$0xf]
    %v207 = vld [vmem:[%s3 + $0xc] sm:$0xf]
    %v208 = vld [vmem:[%s3 + $0x10] sm:$0xf]
    %v209 = vld [vmem:[%s3 + $0x14] sm:$0xf]
    %v210 = vld [vmem:[%s3 + $0x18] sm:$0xf]
    %v211 = vld [vmem:[%s3 + $0x1c] sm:$0xf]
    %v212 = vld [vmem:[%s3 + $0x20] sm:$0xf]
    %v213 = vld [vmem:[%s3 + $0x24] sm:$0xf]
    %v214 = vld [vmem:[%s3 + $0x28] sm:$0xf]
    %v215 = vld [vmem:[%s3 + $0x2c] sm:$0xf]
    %v216 = vld [vmem:[%s3 + $0x30] sm:$0xf]
    %v217 = vld [vmem:[%s3 + $0x34] sm:$0xf]
    %v218 = vld [vmem:[%s3 + $0x38] sm:$0xf]
    %v219 = vld [vmem:[%s3 + $0x3c] sm:$0xf]
    %v220 = vld [vmem:[%s3 + $0x40] sm:$0xf]
    %v221 = vld [vmem:[%s3 + $0x44] sm:$0xf]
    %v222 = vld [vmem:[%s3 + $0x48] sm:$0xf]
    %v223 = vld [vmem:[%s3 + $0x4c] sm:$0xf]
    %v224 = vld [vmem:[%s3 + $0x50] sm:$0xf]
    %v225 = vld [vmem:[%s3 + $0x54] sm:$0xf]
    %v226 = vld [vmem:[%s3 + $0x58] sm:$0xf]
    %v227 = vld [vmem:[%s3 + $0x5c] sm:$0xf]
    %v228 = vld [vmem:[%s3 + $0x60] sm:$0xf]
    %v229 = vld [vmem:[%s3 + $0x64] sm:$0xf]
    %v230 = vld [vmem:[%s3 + $0x68] sm:$0xf]
    %v231 = vld [vmem:[%s3 + $0x6c] sm:$0xf]
    %v232 = vld [vmem:[%s3 + $0x70] sm:$0xf]
    %v233 = vld [vmem:[%s3 + $0x74] sm:$0xf]
    %v234 = vld [vmem:[%s3 + $0x78] sm:$0xf]
    %v235 = vld [vmem:[%s3 + $0x7c] sm:$0xf]
    %v236 = vld [vmem:[%s3 + $0x80] sm:$0xf]
    %v237 = vld [vmem:[%s3 + $0x84] sm:$0xf]
    %v238 = vld [vmem:[%s3 + $0x88] sm:$0xf]
    %v239 = vld [vmem:[%s3 + $0x8c] sm:$0xf]
    %v240 = vld [vmem:[%s3 + $0x90] sm:$0xf]
    %v241 = vld [vmem:[%s3 + $0x94] sm:$0xf]
    %v242 = vld [vmem:[%s3 + $0x98] sm:$0xf]
    %v243 = vld [vmem:[%s3 + $0x9c] sm:$0xf]
    %v244 = vld [vmem:[%s3 + $0xa0] sm:$0xf]
    %v245 = vld [vmem:[%s3 + $0xa4] sm:$0xf]
    %v246 = vld [vmem:[%s3 + $0xa8] sm:$0xf]
    %v247 = vld [vmem:[%s3 + $0xac] sm:$0xf]
    %v248 = vld [vmem:[%s3 + $0xb0] sm:$0xf]
    %v249 = vld [vmem:[%s3 + $0xb4] sm:$0xf]
    %v250 = vld [vmem:[%s3 + $0xb8] sm:$0xf]
    %v251 = vld [vmem:[%s3 + $0xbc] sm:$0xf]
    %v252 = vld [vmem:[%s3 + $0xc0] sm:$0xf]
    %v253 = vld [vmem:[%s3 + $0xc4] sm:$0xf]
    %v254 = vld [vmem:[%s3 + $0xc8] sm:$0xf]
    %v255 = vld [vmem:[%s3 + $0xcc] sm:$0xf]
    %v256 = vld [vmem:[%s3 + $0xd0] sm:$0xf]
    %v257 = vld [vmem:[%s3 + $0xd4] sm:$0xf]
    %v258 = vld [vmem:[%s3 + $0xd8] sm:$0xf]
    %v259 = vld [vmem:[%s3 + $0xdc] sm:$0xf]
    %v260 = vld [vmem:[%s3 + $0xe0] sm:$0xf]
    %v261 = vld [vmem:[%s3 + $0xe4] sm:$0xf]
    %v262 = vld [vmem:[%s3 + $0xe8] sm:$0xf]
    %v263 = vld [vmem:[%s3 + $0xec] sm:$0xf]
    %v264 = vld [vmem:[%s3 + $0xf0] sm:$0xf]
    %v265 = vld [vmem:[%s3 + $0xf4] sm:$0xf]
    %v266 = vld [vmem:[%s3 + $0xf8] sm:$0xf]
    %v267 = vld [vmem:[%s3 + $0xfc] sm:$0xf]
    %v268 = vld [vmem:[%s4] sm:$0x1]
    %v270 = vlaneseq
    %v271 = vshrl.u32 %v270, 7
    %v272 = vsub.s32 0, %v271
    %v273 = vrot.slane %v268, %v272
    %v339 = vunpack.c.l.b16 %v204
    %v340 = vunpack.c.l.b16 %v205
    %v341 = vunpack.c.l.b16 %v206
    %v342 = vunpack.c.l.b16 %v207
    %v343 = vunpack.c.l.b16 %v208
    %v344 = vunpack.c.l.b16 %v209
    %v345 = vunpack.c.l.b16 %v210
    %v346 = vunpack.c.l.b16 %v211
    %v347 = vunpack.c.l.b16 %v212
    %v348 = vunpack.c.l.b16 %v213
    %v349 = vunpack.c.l.b16 %v214
    %v350 = vunpack.c.l.b16 %v215
    %v351 = vunpack.c.l.b16 %v216
    %v352 = vunpack.c.l.b16 %v217
    %v353 = vunpack.c.l.b16 %v218
    %v354 = vunpack.c.l.b16 %v219
    %v355 = vunpack.c.l.b16 %v220
    %v356 = vunpack.c.l.b16 %v221
    %v357 = vunpack.c.l.b16 %v222
    %v358 = vunpack.c.l.b16 %v223
    %v359 = vunpack.c.l.b16 %v224
    %v360 = vunpack.c.l.b16 %v225
    %v361 = vunpack.c.l.b16 %v226
    %v362 = vunpack.c.l.b16 %v227
    %v363 = vunpack.c.l.b16 %v228
    %v364 = vunpack.c.l.b16 %v229
    %v365 = vunpack.c.l.b16 %v230
    %v366 = vunpack.c.l.b16 %v231
    %v367 = vunpack.c.l.b16 %v232
    %v368 = vunpack.c.l.b16 %v233
    %v369 = vunpack.c.l.b16 %v234
    %v370 = vunpack.c.l.b16 %v235
    %v371 = vunpack.c.l.b16 %v236
    %v372 = vunpack.c.l.b16 %v237
    %v373 = vunpack.c.l.b16 %v238
    %v374 = vunpack.c.l.b16 %v239
    %v375 = vunpack.c.l.b16 %v240
    %v376 = vunpack.c.l.b16 %v241
    %v377 = vunpack.c.l.b16 %v242
    %v378 = vunpack.c.l.b16 %v243
    %v379 = vunpack.c.l.b16 %v244
    %v380 = vunpack.c.l.b16 %v245
    %v381 = vunpack.c.l.b16 %v246
    %v382 = vunpack.c.l.b16 %v247
    %v383 = vunpack.c.l.b16 %v248
    %v384 = vunpack.c.l.b16 %v249
    %v385 = vunpack.c.l.b16 %v250
    %v386 = vunpack.c.l.b16 %v251
    %v387 = vunpack.c.l.b16 %v252
    %v388 = vunpack.c.l.b16 %v253
    %v389 = vunpack.c.l.b16 %v254
    %v390 = vunpack.c.l.b16 %v255
    %v391 = vunpack.c.l.b16 %v256
    %v392 = vunpack.c.l.b16 %v257
    %v393 = vunpack.c.l.b16 %v258
    %v394 = vunpack.c.l.b16 %v259
    %v395 = vunpack.c.l.b16 %v260
    %v396 = vunpack.c.l.b16 %v261
    %v397 = vunpack.c.l.b16 %v262
    %v398 = vunpack.c.l.b16 %v263
    %v399 = vunpack.c.l.b16 %v264
    %v400 = vunpack.c.l.b16 %v265
    %v401 = vunpack.c.l.b16 %v266
    %v402 = vunpack.c.l.b16 %v267
    %v403 = vpack.c.b16 %v340, %v339
    %v404 = vpack.c.b16 %v342, %v341
    %v405 = vpack.c.b16 %v344, %v343
    %v406 = vpack.c.b16 %v346, %v345
    %v407 = vpack.c.b16 %v348, %v347
    %v408 = vpack.c.b16 %v350, %v349
    %v409 = vpack.c.b16 %v352, %v351
    %v410 = vpack.c.b16 %v354, %v353
    %v411 = vpack.c.b16 %v356, %v355
    %v412 = vpack.c.b16 %v358, %v357
    %v413 = vpack.c.b16 %v360, %v359
    %v414 = vpack.c.b16 %v362, %v361
    %v415 = vpack.c.b16 %v364, %v363
    %v416 = vpack.c.b16 %v366, %v365
    %v417 = vpack.c.b16 %v368, %v367
    %v418 = vpack.c.b16 %v370, %v369
    %v419 = vpack.c.b16 %v372, %v371
    %v420 = vpack.c.b16 %v374, %v373
    %v421 = vpack.c.b16 %v376, %v375
    %v422 = vpack.c.b16 %v378, %v377
    %v423 = vpack.c.b16 %v380, %v379
    %v424 = vpack.c.b16 %v382, %v381
    %v425 = vpack.c.b16 %v384, %v383
    %v426 = vpack.c.b16 %v386, %v385
    %v427 = vpack.c.b16 %v388, %v387
    %v428 = vpack.c.b16 %v390, %v389
    %v429 = vpack.c.b16 %v392, %v391
    %v430 = vpack.c.b16 %v394, %v393
    %v431 = vpack.c.b16 %v396, %v395
    %v432 = vpack.c.b16 %v398, %v397
    %v433 = vpack.c.b16 %v400, %v399
    %v434 = vpack.c.b16 %v402, %v401
    %467 = vmatprep.subr.bf16.mxu0 0
    %468 = vmatpush1.bf16.msra.mxu0 %v410
    %469 = vmatprep.subr.bf16.mxu0 0
    %470 = vmatpush1.bf16.msra.mxu0 %v409
    %471 = vmatprep.subr.bf16.mxu0 0
    %472 = vmatpush1.bf16.msra.mxu0 %v408
    %473 = vmatprep.subr.bf16.mxu0 0
    %474 = vmatpush1.bf16.msra.mxu0 %v407
    %475 = vmatprep.subr.bf16.mxu0 0
    %476 = vmatpush1.bf16.msra.mxu0 %v406
    %477 = vmatprep.subr.bf16.mxu0 0
    %478 = vmatpush1.bf16.msra.mxu0 %v405
    %479 = vmatprep.subr.bf16.mxu0 0
    %480 = vmatpush1.bf16.msra.mxu0 %v404
    %481 = vmatprep.subr.bf16.mxu0 0
    %482 = vmatpush1.bf16.msra.mxu0 %v403
    %483 = vmatprep.subr.bf16.mxu0 0
    %484 = vmatpush2.bf16.msra.mxu0 %v418
    %485 = vmatprep.subr.bf16.mxu0 0
    %486 = vmatpush2.bf16.msra.mxu0 %v417
    %487 = vmatprep.subr.bf16.mxu0 0
    %488 = vmatpush2.bf16.msra.mxu0 %v416
    %489 = vmatprep.subr.bf16.mxu0 0
    %490 = vmatpush2.bf16.msra.mxu0 %v415
    %491 = vmatprep.subr.bf16.mxu0 0
    %492 = vmatpush2.bf16.msra.mxu0 %v414
    %493 = vmatprep.subr.bf16.mxu0 0
    %494 = vmatpush2.bf16.msra.mxu0 %v413
    %495 = vmatprep.subr.bf16.mxu0 0
    %496 = vmatpush2.bf16.msra.mxu0 %v412
    %497 = vmatprep.subr.bf16.mxu0 0
    %498 = vmatpush2.bf16.msra.mxu0 %v411
    %499 = vmatprep.mubr.bf16.mxu0 %v201
    %500 = vmatmul.mubr.bf16.gmra.mxu0 %v200
    %v501 = vpop.f32.mrf.mxu0
    %v502 = vadd.f32 %v273, %v501
    %v503 = vpop.f32.mrf.mxu0
    %v504 = vpop.f32.mrf.mxu0
    %v505 = vadd.f32 %v273, %v504
    %v506 = vpop.f32.mrf.mxu0
    %507 = vdwg.mxu0
    %508 = vmatprep.subr.bf16.mxu0 0
    %509 = vmatpush1.bf16.msra.mxu0 %v426
    %510 = vmatprep.subr.bf16.mxu0 0
    %511 = vmatpush1.bf16.msra.mxu0 %v425
    %512 = vmatprep.subr.bf16.mxu0 0
    %513 = vmatpush1.bf16.msra.mxu0 %v424
    %514 = vmatprep.subr.bf16.mxu0 0
    %515 = vmatpush1.bf16.msra.mxu0 %v423
    %516 = vmatprep.subr.bf16.mxu0 0
    %517 = vmatpush1.bf16.msra.mxu0 %v422
    %518 = vmatprep.subr.bf16.mxu0 0
    %519 = vmatpush1.bf16.msra.mxu0 %v421
    %520 = vmatprep.subr.bf16.mxu0 0
    %521 = vmatpush1.bf16.msra.mxu0 %v420
    %522 = vmatprep.subr.bf16.mxu0 0
    %523 = vmatpush1.bf16.msra.mxu0 %v419
    %524 = vmatprep.subr.bf16.mxu0 0
    %525 = vmatpush2.bf16.msra.mxu0 %v434
    %526 = vmatprep.subr.bf16.mxu0 0
    %527 = vmatpush2.bf16.msra.mxu0 %v433
    %528 = vmatprep.subr.bf16.mxu0 0
    %529 = vmatpush2.bf16.msra.mxu0 %v432
    %530 = vmatprep.subr.bf16.mxu0 0
    %531 = vmatpush2.bf16.msra.mxu0 %v431
    %532 = vmatprep.subr.bf16.mxu0 0
    %533 = vmatpush2.bf16.msra.mxu0 %v430
    %534 = vmatprep.subr.bf16.mxu0 0
    %535 = vmatpush2.bf16.msra.mxu0 %v429
    %536 = vmatprep.subr.bf16.mxu0 0
    %537 = vmatpush2.bf16.msra.mxu0 %v428
    %538 = vmatprep.subr.bf16.mxu0 0
    %539 = vmatpush2.bf16.msra.mxu0 %v427
    %540 = vmatprep.mubr.bf16.mxu0 %v203
    %541 = vmatmul.mubr.bf16.gmra.mxu0 %v202
    %v542 = vpop.f32.mrf.mxu0
    %v543 = vadd.f32 %v502, %v542
    %v544 = vpop.f32.mrf.mxu0
    %v545 = vpop.f32.mrf.mxu0
    %v546 = vadd.f32 %v505, %v545
    %v547 = vpop.f32.mrf.mxu0
    %548 = vdwg.mxu0
    %v549 = vmax.f32 %v543, 0.0
    %v550 = vmax.f32 %v546, 0.0
    %v551 = vpack.c.bf16 %v550, %v549
    %v552 = vld [vmem:[%s5] sm:$0x1]
    %s553 = sld [smem:[#allocation2]]
    %v554 = vstv %s553
    %vm555 = vcmask 523264
    %v557 = vsel %vm555, %v552, 0
    %v560 = vsel %vm555, %v551, 0
    %562 = vmatprep.subr.bf16.mxu0 0
    %563 = vmatpush1.bf16.xpose.msra.mxu0 0
    %564 = vmatprep.subr.bf16.mxu0 0
    %565 = vmatpush1.bf16.xpose.msra.mxu0 0
    %566 = vmatprep.subr.bf16.mxu0 0
    %567 = vmatpush1.bf16.xpose.msra.mxu0 0
    %568 = vmatprep.subr.bf16.mxu0 0
    %569 = vmatpush1.bf16.xpose.msra.mxu0 0
    %570 = vmatprep.subr.bf16.mxu0 0
    %571 = vmatpush1.bf16.xpose.msra.mxu0 0
    %572 = vmatprep.subr.bf16.mxu0 0
    %573 = vmatpush1.bf16.xpose.msra.mxu0 0
    %574 = vmatprep.subr.bf16.mxu0 0
    %575 = vmatpush1.bf16.xpose.msra.mxu0 0
    %576 = vmatprep.subr.bf16.mxu0 0
    %577 = vmatpush1.bf16.xpose.msra.mxu0 %v560
    %578 = vmatprep.subr.bf16.mxu0 0
    %579 = vmatpush2.bf16.xpose.msra.mxu0 0
    %580 = vmatprep.subr.bf16.mxu0 0
    %581 = vmatpush2.bf16.xpose.msra.mxu0 0
    %582 = vmatprep.subr.bf16.mxu0 0
    %583 = vmatpush2.bf16.xpose.msra.mxu0 0
    %584 = vmatprep.subr.bf16.mxu0 0
    %585 = vmatpush2.bf16.xpose.msra.mxu0 0
    %586 = vmatprep.subr.bf16.mxu0 0
    %587 = vmatpush2.bf16.xpose.msra.mxu0 0
    %588 = vmatprep.subr.bf16.mxu0 0
    %589 = vmatpush2.bf16.xpose.msra.mxu0 0
    %590 = vmatprep.subr.bf16.mxu0 0
    %591 = vmatpush2.bf16.xpose.msra.mxu0 0
    %592 = vmatprep.subr.bf16.mxu0 0
    %593 = vmatpush2.bf16.xpose.msra.mxu0 0
    %594 = vmatprep.mubr.bf16.mxu0 0
    %595 = vmatmul.mubr.bf16.gmra.mxu0 %v557
    %v596 = vpop.f32.mrf.mxu0
    %v597 = vadd.f32 %v554, %v596
    %v598 = vpop.f32.mrf.mxu0
    %v599 = vpop.f32.mrf.mxu0
    %v600 = vpop.f32.mrf.mxu0
    %601 = vdwg.mxu0
    %v602 = vxor.u32 %v597, 2147483648
    %v603 = vmul.f32 %v602, 1.442695
    %v604 = vpow.pop %v603
    %v605 = vadd.f32 %v604, 1.0
    %v606 = vrcp.pop %v605
    %v607 = vmul.f32 1.0, %v606
    %vm608 = vcmask 122880
    %609 = vst.msk [vmem:[#allocation3] sm:$0x1] %vm608, %v607
    // Predicated region
    $region30: #{mlp_forward.1} parent=1 // pred_check
      _
    $region31: #{mlp_forward.1} parent=1 // pred_check_branch
      %611 = sbr.rel (0) target = $region33
    $region32: #{mlp_forward.1} parent=1 // pred_region
      %s613 = ssub.s32 16, 16
      %614 = vsyncadd [#allocation4], %s613
      %s616 = sshll.u32 [#allocation3], 4
      %s617 = int_to_ptr.vmem [resolvable:$true] %s616
      %619 = dma.vmem_to_hbm [thread:$0]  %s617, 16, %s7, [#allocation4]
    $region33: #{mlp_forward.1} parent=1 // pred_fallthru
      _
    // Predicated region
    $region34: #{mlp_forward.1} parent=1 // pred_check
      _
    $region35: #{mlp_forward.1} parent=1 // pred_check_branch
      %621 = sbr.rel (0) target = $region37
    $region36: #{mlp_forward.1} parent=1 // pred_region
      %622 = dma.done [#allocation4], 16
    $region37: #{mlp_forward.1} parent=1 // pred_fallthru
      _
    %623 = vsyncpa [#allocation4], 1

</llo_original>
